<compile_context>
chip_gen: v6e
topology: v6e:2x2x1
jax: 0.10.0
libtpu: 0.0.40
codegen_flags: <defaults>
</compile_context>

<pallas_src>
import math

import jax
import jax.numpy as jnp
from jax.experimental import pallas as pl
from jax.experimental.pallas import tpu as pltpu


def _cdiv(a: int, b: int) -> int:
    return -(-a // b)


def _round_up(x: int, m: int) -> int:
    return ((x + m - 1) // m) * m


# -----------------------------------------------------------------------------
# Kernels
# -----------------------------------------------------------------------------
def _fourier_packed_kernel(t_ref, g_ref, f_ref, o_ref):
    """Lane-dense packed kernel (used when D is not a multiple of 256).

    t_ref : [TR, R]   R time indices packed per row (float32)
    g_ref : [1, L2]   precomputed lane -> packed-token index (int32), L2 = R*half
    f_ref : [1, L2]   freqs tiled R times: f_ref[0, r*half + c] = freqs[c]
    o_ref : [TR, L]   interleaved output, L = R*D = 2*L2; token r of a row
                      occupies lanes [r*D, (r+1)*D) as [sin half | cos half]
    """
    r = t_ref.shape[1]
    l2 = f_ref.shape[1]
    half = l2 // r
    d = 2 * half

    group = g_ref[...]                       # [1, L2] int32, lane -> token slot

    # Exact lane-expansion of t (pure selects): lane r*half+c of row m carries
    # t_ref[m, r] bit-exactly, so the f32 product below is identical to the
    # reference's time * freq multiply.
    # TODO(synk): for tiny D (R >= 8) this select chain grows linearly; spread
    # t via a pltpu.roll doubling network (idle XLU slot) if it ever shows up.
    t_exp = jnp.where(group == 0, t_ref[:, 0:1], jnp.float32(0.0))
    for rr in range(1, r):
        t_exp = jnp.where(group == rr, t_ref[:, rr:rr + 1], t_exp)

    arg = t_exp * f_ref[...]                 # [TR, L2], exact f32 product
    s = jnp.sin(arg)                         # half-width: one transcendental
    c = jnp.cos(arg)                         # per OUTPUT element in total

    # Restore the interleaved per-token [sin|cos] layout with static narrow
    # stores into the VMEM tile (store/XLU slots).  The HBM-side writeback of
    # o_ref remains one dense, 128-multiple-lane block per grid step.
    for rr in range(r):
        o_ref[:, rr * d:rr * d + half] = (
            s[:, rr * half:(rr + 1) * half].astype(o_ref.dtype))
        o_ref[:, rr * d + half:(rr + 1) * d] = (
            c[:, rr * half:(rr + 1) * half].astype(o_ref.dtype))


def _fourier_wide_kernel(t_ref, f_ref, o_ref):
    """Unpacked kernel for D % 256 == 0 (each half is a multiple of 128 lanes).

    t_ref : [TR, 1], f_ref : [1, half], o_ref : [TR, 2*half]
    """
    half = f_ref.shape[1]
    arg = t_ref[...] * f_ref[...]            # [TR, half], lane-dense, exact f32
    o_ref[:, :half] = jnp.sin(arg).astype(o_ref.dtype)
    o_ref[:, half:] = jnp.cos(arg).astype(o_ref.dtype)


# -----------------------------------------------------------------------------
# Tiling
# -----------------------------------------------------------------------------
def _pick_tiling(row_bytes: int, n_rows: int, vmem_budget_bytes: int):
    """Pick (tile_rows, grid_len).

    * Budgets the double-buffered time-index + output blocks (including the
      128-lane padding of the narrow time-index block) against
      `vmem_budget_bytes`, which defaults to 12 MiB so it fits v5e's 16 MiB
      scoped VMEM default and v7x's 32 MiB scoped / 64 MiB physical.
    * Balances tiles across the grid so row padding is at most ~8*grid rows.
    * Keeps grid length >= 2 when there is enough work so v7x can shard the
      "parallel" axis across its two TensorCores.
    """
    budget = max(int(vmem_budget_bytes) - (256 << 10), 1 << 20)
    tr_cap = max(8, (budget // (2 * row_bytes)) // 8 * 8)
    g = _cdiv(n_rows, tr_cap)
    if g == 1 and n_rows >= 16:
        g = 2
    if g == 1:
        tr = n_rows            # single full-extent block: no 8-row padding needed
    else:
        tr = _round_up(_cdiv(n_rows, g), 8)
    grid = _cdiv(n_rows, tr)
    return tr, grid


# -----------------------------------------------------------------------------
# Wrapper
# -----------------------------------------------------------------------------
def fourier_time_embedding(time_indices, freqs, *, out_dtype=jnp.float32,
                           vmem_budget_bytes=12 << 20):
    """time_indices: [B, T] (int or float); freqs: [D//2] float32 -> [B, T, D].

    NOTE: integer time indices > 2^24 lose precision in the float32 cast, same
    as the PyTorch float path.
    """
    B, T = time_indices.shape
    half = freqs.shape[0]
    D = 2 * half
    N = B * T

    t_flat = time_indices.reshape(N).astype(jnp.float32)
    freqs = freqs.astype(jnp.float32)
    itemsize = jnp.dtype(out_dtype).itemsize

    if D % 256 == 0:
        # sin/cos halves are already multiples of 128 lanes -> no packing
        # needed, dense half-width stores, one transcendental per element.
        n_rows = N
        row_bytes = D * itemsize + 128 * 4        # out row + lane-padded (tr,1) t row
        tr, grid = _pick_tiling(row_bytes, n_rows, vmem_budget_bytes)
        n_rows_pad = grid * tr
        pad = n_rows_pad - N

        t_col = (t_flat if pad == 0 else jnp.pad(t_flat, (0, pad))).reshape(n_rows_pad, 1)
        f_row = freqs.reshape(1, half)

        out_flat = pl.pallas_call(
            _fourier_wide_kernel,
            out_shape=jax.ShapeDtypeStruct((n_rows_pad, D), out_dtype),
            grid=(grid,),
            in_specs=[
                pl.BlockSpec((tr, 1), lambda i: (i, 0)),
                pl.BlockSpec((1, half), lambda i: (0, 0)),
            ],
            out_specs=pl.BlockSpec((tr, D), lambda i: (i, 0)),
            compiler_params=pltpu.CompilerParams(
                dimension_semantics=("parallel",)),
            cost_estimate=pl.CostEstimate(
                flops=3 * n_rows_pad * D,
                transcendentals=n_rows_pad * D,
                bytes_accessed=n_rows_pad * D * itemsize + n_rows_pad * 4 + half * 4),
        )(t_col, f_row)

        if pad == 0:                      # fast path: no slice copy
            return out_flat.reshape(B, T, D)
        return out_flat[:N].reshape(B, T, D)

    # Lane-dense packed path: pack R tokens per output row so the lane extent
    # R*D is a multiple of 128 (dense HBM stores, full vreg lane utilisation).
    R = 128 // math.gcd(D, 128)
    L = R * D
    L2 = R * half
    n_rows = _cdiv(N, R)
    row_bytes = L * itemsize + 128 * 4            # out row + lane-padded (tr,R) t row
    tr, grid = _pick_tiling(row_bytes, n_rows, vmem_budget_bytes)
    n_rows_pad = grid * tr
    n_tok_pad = n_rows_pad * R
    pad = n_tok_pad - N

    t_packed = (t_flat if pad == 0 else jnp.pad(t_flat, (0, pad))).reshape(n_rows_pad, R)
    f_row = jnp.tile(freqs, (R,)).reshape(1, L2)                       # [1, L2]
    g_row = (jnp.arange(L2, dtype=jnp.int32) // half).reshape(1, L2)   # [1, L2]

    out_packed = pl.pallas_call(
        _fourier_packed_kernel,
        out_shape=jax.ShapeDtypeStruct((n_rows_pad, L), out_dtype),
        grid=(grid,),
        in_specs=[
            pl.BlockSpec((tr, R), lambda i: (i, 0)),
            pl.BlockSpec((1, L2), lambda i: (0, 0)),
            pl.BlockSpec((1, L2), lambda i: (0, 0)),
        ],
        out_specs=pl.BlockSpec((tr, L), lambda i: (i, 0)),
        compiler_params=pltpu.CompilerParams(
            dimension_semantics=("parallel",)),
        cost_estimate=pl.CostEstimate(
            flops=(2 * R + 2) * n_rows_pad * L2,
            transcendentals=n_rows_pad * L,        # one per output element
            bytes_accessed=n_rows_pad * L * itemsize + n_tok_pad * 4 + 2 * L2 * 4),
    )(t_packed, g_row, f_row)

    if pad == 0:                          # fast path: no slice copy
        return out_packed.reshape(B, T, D)
    return out_packed.reshape(n_tok_pad, D)[:N].reshape(B, T, D)


def make_freqs(embedding_dim, time_steps):
    # Matches torch.exp(torch.linspace(0, time_steps, embedding_dim // 2)).
    # NOTE: parity-preserving but numerically fragile -- exp overflows f32 for
    # time_steps >~ 88 and sin/cos of huge args lose precision (same in PyTorch).
    return jnp.exp(jnp.linspace(0.0, float(time_steps), embedding_dim // 2,
                                dtype=jnp.float32))


def _reference(time_indices, freqs):
    sin_in = time_indices[..., None].astype(jnp.float32) * freqs
    return jnp.concatenate([jnp.sin(sin_in), jnp.cos(sin_in)], axis=-1)


if __name__ == "__main__":
    batch = 2
    time_steps = 8
    embedding_dim = 32
    max_time = 100

    key = jax.random.PRNGKey(0)
    k1, k2 = jax.random.split(key)
    time_indices = jax.random.randint(k1, (batch, time_steps), 0, max_time,
                                      dtype=jnp.int32)

    # ---- packed lane-dense path (D = 32 < 256), matches the module config ----
    freqs = make_freqs(embedding_dim, time_steps)
    out = jax.block_until_ready(fourier_time_embedding(time_indices, freqs))
    ref = _reference(time_indices, freqs)
    assert out.shape == (batch, time_steps, embedding_dim)
    assert jnp.allclose(out, ref, atol=1e-5, rtol=1e-5)

    # ---- wide path (D % 256 == 0) -------------------------------------------
    embedding_dim_wide = 256
    freqs_w = make_freqs(embedding_dim_wide, time_steps)
    out_w = jax.block_until_ready(fourier_time_embedding(time_indices, freqs_w))
    ref_w = _reference(time_indices, freqs_w)
    assert out_w.shape == (batch, time_steps, embedding_dim_wide)
    assert jnp.allclose(out_w, ref_w, atol=1e-5, rtol=1e-5)

    # ---- packed path, multi-step grid + no-pad fast path ---------------------
    time_indices_big = jax.random.randint(k2, (8, 64), 0, max_time,
                                          dtype=jnp.int32)
    out_b = jax.block_until_ready(fourier_time_embedding(time_indices_big, freqs))
    ref_b = _reference(time_indices_big, freqs)
    assert out_b.shape == (8, 64, embedding_dim)
    assert jnp.allclose(out_b, ref_b, atol=1e-5, rtol=1e-5)

    print("KERNEL_OK")
</pallas_src>

<mosaic_0001>
module attributes {stable_mosaic.version = 11 : i64} {
  func.func @_fourier_packed_kernel(%arg0: i32, %arg1: memref<4x4xf32, #tpu.memory_space<vmem>>, %arg2: memref<1x64xi32, #tpu.memory_space<vmem>>, %arg3: memref<1x64xf32, #tpu.memory_space<vmem>>, %arg4: memref<4x128xf32, #tpu.memory_space<vmem>>) attributes {dimension_semantics = [#tpu.dimension_semantics<parallel>], iteration_bounds = array<i64: 1>, scalar_prefetch = 0 : i64, scratch_operands = 0 : i64, tpu.core_type = #tpu.core_type<tc>, window_params = [{transform_indices = @transform_0, window_bounds = array<i64: 4, 4>}, {pipeline_mode = #tpu.pipeline_mode<synchronous>, transform_indices = @transform_1, window_bounds = array<i64: 1, 64>}, {pipeline_mode = #tpu.pipeline_mode<synchronous>, transform_indices = @transform_2, window_bounds = array<i64: 1, 64>}, {transform_indices = @transform_3, window_bounds = array<i64: 4, 128>}]} {
    %c0 = arith.constant 0 : index
    %c0_0 = arith.constant 0 : index
    %0 = vector.load %arg2[%c0, %c0_0] : memref<1x64xi32, #tpu.memory_space<vmem>>, vector<1x64xi32>
    %c0_i32 = arith.constant 0 : i32
    %1 = vector.broadcast %c0_i32 : i32 to vector<1x64xi32>
    %2 = arith.cmpi eq, %0, %1 : vector<1x64xi32>
    %c0_1 = arith.constant 0 : index
    %c0_2 = arith.constant 0 : index
    %3 = vector.load %arg1[%c0_1, %c0_2] : memref<4x4xf32, #tpu.memory_space<vmem>>, vector<4x1xf32>
    %cst = arith.constant 0.000000e+00 : f32
    %4 = vector.shape_cast %2 : vector<1x64xi1> to vector<1x64xi1>
    %5 = vector.broadcast %4 : vector<1x64xi1> to vector<4x64xi1>
    %6 = vector.shape_cast %3 : vector<4x1xf32> to vector<4x1xf32>
    %7 = vector.broadcast %6 : vector<4x1xf32> to vector<4x64xf32>
    %8 = vector.broadcast %cst : f32 to vector<4x64xf32>
    %9 = arith.select %5, %7, %8 : vector<4x64xi1>, vector<4x64xf32>
    %c1_i32 = arith.constant 1 : i32
    %10 = vector.broadcast %c1_i32 : i32 to vector<1x64xi32>
    %11 = arith.cmpi eq, %0, %10 : vector<1x64xi32>
    %c0_3 = arith.constant 0 : index
    %c1 = arith.constant 1 : index
    %12 = vector.load %arg1[%c0_3, %c1] : memref<4x4xf32, #tpu.memory_space<vmem>>, vector<4x1xf32>
    %13 = vector.shape_cast %11 : vector<1x64xi1> to vector<1x64xi1>
    %14 = vector.broadcast %13 : vector<1x64xi1> to vector<4x64xi1>
    %15 = vector.shape_cast %12 : vector<4x1xf32> to vector<4x1xf32>
    %16 = vector.broadcast %15 : vector<4x1xf32> to vector<4x64xf32>
    %17 = arith.select %14, %16, %9 : vector<4x64xi1>, vector<4x64xf32>
    %c2_i32 = arith.constant 2 : i32
    %18 = vector.broadcast %c2_i32 : i32 to vector<1x64xi32>
    %19 = arith.cmpi eq, %0, %18 : vector<1x64xi32>
    %c0_4 = arith.constant 0 : index
    %c2 = arith.constant 2 : index
    %20 = vector.load %arg1[%c0_4, %c2] : memref<4x4xf32, #tpu.memory_space<vmem>>, vector<4x1xf32>
    %21 = vector.shape_cast %19 : vector<1x64xi1> to vector<1x64xi1>
    %22 = vector.broadcast %21 : vector<1x64xi1> to vector<4x64xi1>
    %23 = vector.shape_cast %20 : vector<4x1xf32> to vector<4x1xf32>
    %24 = vector.broadcast %23 : vector<4x1xf32> to vector<4x64xf32>
    %25 = arith.select %22, %24, %17 : vector<4x64xi1>, vector<4x64xf32>
    %c3_i32 = arith.constant 3 : i32
    %26 = vector.broadcast %c3_i32 : i32 to vector<1x64xi32>
    %27 = arith.cmpi eq, %0, %26 : vector<1x64xi32>
    %c0_5 = arith.constant 0 : index
    %c3 = arith.constant 3 : index
    %28 = vector.load %arg1[%c0_5, %c3] : memref<4x4xf32, #tpu.memory_space<vmem>>, vector<4x1xf32>
    %29 = vector.shape_cast %27 : vector<1x64xi1> to vector<1x64xi1>
    %30 = vector.broadcast %29 : vector<1x64xi1> to vector<4x64xi1>
    %31 = vector.shape_cast %28 : vector<4x1xf32> to vector<4x1xf32>
    %32 = vector.broadcast %31 : vector<4x1xf32> to vector<4x64xf32>
    %33 = arith.select %30, %32, %25 : vector<4x64xi1>, vector<4x64xf32>
    %c0_6 = arith.constant 0 : index
    %c0_7 = arith.constant 0 : index
    %34 = vector.load %arg3[%c0_6, %c0_7] : memref<1x64xf32, #tpu.memory_space<vmem>>, vector<1x64xf32>
    %35 = vector.broadcast %34 : vector<1x64xf32> to vector<4x64xf32>
    %36 = arith.mulf %33, %35 : vector<4x64xf32>
    %37 = math.sin %36 : vector<4x64xf32>
    %38 = math.cos %36 : vector<4x64xf32>
    %39 = vector.extract_strided_slice %37 {offsets = [0, 0], sizes = [4, 16], strides = [1, 1]} : vector<4x64xf32> to vector<4x16xf32>
    %c0_8 = arith.constant 0 : index
    %c0_9 = arith.constant 0 : index
    %40 = vector.load %arg4[%c0_8, %c0_9] : memref<4x128xf32, #tpu.memory_space<vmem>>, vector<4x16xf32>
    tpu.vector_store %arg4[%c0_8, %c0_9], %39 {strides = array<i32>} : memref<4x128xf32, #tpu.memory_space<vmem>>, vector<4x16xf32>,
    %41 = vector.extract_strided_slice %38 {offsets = [0, 0], sizes = [4, 16], strides = [1, 1]} : vector<4x64xf32> to vector<4x16xf32>
    %c0_10 = arith.constant 0 : index
    %c16 = arith.constant 16 : index
    %42 = vector.load %arg4[%c0_10, %c16] : memref<4x128xf32, #tpu.memory_space<vmem>>, vector<4x16xf32>
    tpu.vector_store %arg4[%c0_10, %c16], %41 {strides = array<i32>} : memref<4x128xf32, #tpu.memory_space<vmem>>, vector<4x16xf32>,
    %43 = vector.extract_strided_slice %37 {offsets = [0, 16], sizes = [4, 16], strides = [1, 1]} : vector<4x64xf32> to vector<4x16xf32>
    %c0_11 = arith.constant 0 : index
    %c32 = arith.constant 32 : index
    %44 = vector.load %arg4[%c0_11, %c32] : memref<4x128xf32, #tpu.memory_space<vmem>>, vector<4x16xf32>
    tpu.vector_store %arg4[%c0_11, %c32], %43 {strides = array<i32>} : memref<4x128xf32, #tpu.memory_space<vmem>>, vector<4x16xf32>,
    %45 = vector.extract_strided_slice %38 {offsets = [0, 16], sizes = [4, 16], strides = [1, 1]} : vector<4x64xf32> to vector<4x16xf32>
    %c0_12 = arith.constant 0 : index
    %c48 = arith.constant 48 : index
    %46 = vector.load %arg4[%c0_12, %c48] : memref<4x128xf32, #tpu.memory_space<vmem>>, vector<4x16xf32>
    tpu.vector_store %arg4[%c0_12, %c48], %45 {strides = array<i32>} : memref<4x128xf32, #tpu.memory_space<vmem>>, vector<4x16xf32>,
    %47 = vector.extract_strided_slice %37 {offsets = [0, 32], sizes = [4, 16], strides = [1, 1]} : vector<4x64xf32> to vector<4x16xf32>
    %c0_13 = arith.constant 0 : index
    %c64 = arith.constant 64 : index
    %48 = vector.load %arg4[%c0_13, %c64] : memref<4x128xf32, #tpu.memory_space<vmem>>, vector<4x16xf32>
    tpu.vector_store %arg4[%c0_13, %c64], %47 {strides = array<i32>} : memref<4x128xf32, #tpu.memory_space<vmem>>, vector<4x16xf32>,
    %49 = vector.extract_strided_slice %38 {offsets = [0, 32], sizes = [4, 16], strides = [1, 1]} : vector<4x64xf32> to vector<4x16xf32>
    %c0_14 = arith.constant 0 : index
    %c80 = arith.constant 80 : index
    %50 = vector.load %arg4[%c0_14, %c80] : memref<4x128xf32, #tpu.memory_space<vmem>>, vector<4x16xf32>
    tpu.vector_store %arg4[%c0_14, %c80], %49 {strides = array<i32>} : memref<4x128xf32, #tpu.memory_space<vmem>>, vector<4x16xf32>,
    %51 = vector.extract_strided_slice %37 {offsets = [0, 48], sizes = [4, 16], strides = [1, 1]} : vector<4x64xf32> to vector<4x16xf32>
    %c0_15 = arith.constant 0 : index
    %c96 = arith.constant 96 : index
    %52 = vector.load %arg4[%c0_15, %c96] : memref<4x128xf32, #tpu.memory_space<vmem>>, vector<4x16xf32>
    tpu.vector_store %arg4[%c0_15, %c96], %51 {strides = array<i32>} : memref<4x128xf32, #tpu.memory_space<vmem>>, vector<4x16xf32>,
    %53 = vector.extract_strided_slice %38 {offsets = [0, 48], sizes = [4, 16], strides = [1, 1]} : vector<4x64xf32> to vector<4x16xf32>
    %c0_16 = arith.constant 0 : index
    %c112 = arith.constant 112 : index
    %54 = vector.load %arg4[%c0_16, %c112] : memref<4x128xf32, #tpu.memory_space<vmem>>, vector<4x16xf32>
    tpu.vector_store %arg4[%c0_16, %c112], %53 {strides = array<i32>} : memref<4x128xf32, #tpu.memory_space<vmem>>, vector<4x16xf32>,
    return
  }
  func.func @transform_0(%arg0: i32) -> (i32, i32) {
    %c0_i32 = arith.constant 0 : i32
    %c0_i32_0 = arith.constant 0 : i32
    return %arg0, %c0_i32 : i32, i32
  }
  func.func @transform_1(%arg0: i32) -> (i32, i32) {
    %c0_i32 = arith.constant 0 : i32
    %c0_i32_0 = arith.constant 0 : i32
    %c0_i32_1 = arith.constant 0 : i32
    return %c0_i32, %c0_i32_0 : i32, i32
  }
  func.func @transform_2(%arg0: i32) -> (i32, i32) {
    %c0_i32 = arith.constant 0 : i32
    %c0_i32_0 = arith.constant 0 : i32
    %c0_i32_1 = arith.constant 0 : i32
    return %c0_i32, %c0_i32_0 : i32, i32
  }
  func.func @transform_3(%arg0: i32) -> (i32, i32) {
    %c0_i32 = arith.constant 0 : i32
    %c0_i32_0 = arith.constant 0 : i32
    return %arg0, %c0_i32 : i32, i32
  }
}

</mosaic_0001>

<llo_original>
// kernel: tpu_custom_call.1
$region0: #{tpu_custom_call.1}
  #allocation0 [shape = 'u32[]', space=smem, size = 0x4, offset = 0x4, fixed_abs, tag = 'smem constant byte address 0x4 - core index']
  #allocation1 [shape = 'u32[144,128]{1,0:T(1,128)}', space=vmem, size = 0x12000, scoped, tag = 'internal scratch']
  %s0 = inlined_call_operand.hbm [shape: f32[4,4], index: 0, kind: input, shape index: {}]
  %s1 = inlined_call_operand.vmem [shape: s32[1,64], index: 1, kind: input, shape index: {}]
  %s2 = inlined_call_operand.vmem [shape: f32[1,64], index: 2, kind: input, shape index: {}]
  %s3 = inlined_call_operand.hbm [shape: f32[4,128], index: 3, kind: output, shape index: {}]
  %s4 = sld [smem:[#allocation0]]
  $region26: #{tpu_custom_call.1} parent=0
    _
  %s6 = ssub.s32 1, %s4
  %s7 = scalar_select 0, %s6, %s4
  $region1: #{tpu_custom_call.1} parent=0
    #allocation2 [shape = 'u8[2048]{0}', space=vmem, size = 0x800, scoped, tag = 'input window, operand 0, single buffered']
    #allocation3 [shape = 's32[1]{0}', space=sflag, size = 0x4, scoped, tag = 'scoped memory for tpu_custom_call.1']
    #allocation4 [shape = 's32[1]{0}', space=sflag, size = 0x4, scoped, tag = 'scoped memory for tpu_custom_call.1']
    #allocation5 [shape = 'u8[2048]{0}', space=vmem, size = 0x800, scoped, tag = 'output window, operand 0, single buffered']
    %8 = vsyncpa [#allocation3], 0
    %9 = vsyncpa [#allocation4], 0
    // Predicated region
    $region2: #{tpu_custom_call.1} parent=1 // pred_check
      _
    $region3: #{tpu_custom_call.1} parent=1 // pred_check_branch
      %11 = sbr.rel (0) target = $region5
    $region4: #{tpu_custom_call.1} parent=1 // pred_region
      %s13 = ssub.s32 64, 64
      %14 = vsyncadd [#allocation3], %s13
      %s16 = sshll.u32 [#allocation2], 4
      %s17 = int_to_ptr.vmem [resolvable:$true] %s16
      %19 = dma.hbm_to_vmem [thread:$0]  %s0, 64, %s17, [#allocation3]
    $region5: #{tpu_custom_call.1} parent=1 // pred_fallthru
      _
    // Predicated region
    $region6: #{tpu_custom_call.1} parent=1 // pred_check
      _
    $region7: #{tpu_custom_call.1} parent=1 // pred_check_branch
      %21 = sbr.rel (0) target = $region9
    $region8: #{tpu_custom_call.1} parent=1 // pred_region
      _
    $region9: #{tpu_custom_call.1} parent=1 // pred_fallthru
      _
    // Predicated region
    $region10: #{tpu_custom_call.1} parent=1 // pred_check
      _
    $region11: #{tpu_custom_call.1} parent=1 // pred_check_branch
      %23 = sbr.rel (0) target = $region13
    $region12: #{tpu_custom_call.1} parent=1 // pred_region
      _
    $region13: #{tpu_custom_call.1} parent=1 // pred_fallthru
      _
    // Predicated region
    $region14: #{tpu_custom_call.1} parent=1 // pred_check
      _
    $region15: #{tpu_custom_call.1} parent=1 // pred_check_branch
      %25 = sbr.rel (0) target = $region17
    $region16: #{tpu_custom_call.1} parent=1 // pred_region
      %26 = dma.done [#allocation3], 64
    $region17: #{tpu_custom_call.1} parent=1 // pred_fallthru
      _
    %v27 = vld [vmem:[%s1] sm:$0x1]
    %vm28 = vcmp.eq.s32.totalorder %v27, 0
    %v29 = vld [vmem:[#allocation2] sm:$0xf]
    %v30 = vsel %vm28, 1, 0
    %v31 = vlaneseq
    %v32 = vshrl.u32 %v31, 7
    %v33 = vsub.s32 0, %v32
    %v34 = vrot.slane %v30, %v33
    %vm35 = vcmp.eq.s32.totalorder %v34, 1
    %37 = vset.pattern.permute.xlu0 0
    %38 = vperm.xlu0 %37, %v29
    %v39 = vpop.permute.xlu0 %38
    %v41 = vsel %vm35, %v39, 0.0
    %vm42 = vcmp.eq.s32.totalorder %v27, 1
    %v43 = vsel %vm42, 1, 0
    %v44 = vlaneseq
    %v45 = vshrl.u32 %v44, 7
    %v46 = vsub.s32 0, %v45
    %v47 = vrot.slane %v43, %v46
    %vm48 = vcmp.eq.s32.totalorder %v47, 1
    %49 = vset.pattern.permute.xlu0 1
    %50 = vperm.xlu0 %49, %v29
    %v51 = vpop.permute.xlu0 %50
    %v53 = vsel %vm48, %v51, %v41
    %vm54 = vcmp.eq.s32.totalorder %v27, 2
    %v55 = vsel %vm54, 1, 0
    %v56 = vlaneseq
    %v57 = vshrl.u32 %v56, 7
    %v58 = vsub.s32 0, %v57
    %v59 = vrot.slane %v55, %v58
    %vm60 = vcmp.eq.s32.totalorder %v59, 1
    %61 = vset.pattern.permute.xlu0 2
    %62 = vperm.xlu0 %61, %v29
    %v63 = vpop.permute.xlu0 %62
    %v65 = vsel %vm60, %v63, %v53
    %vm66 = vcmp.eq.s32.totalorder %v27, 3
    %v67 = vsel %vm66, 1, 0
    %v68 = vlaneseq
    %v69 = vshrl.u32 %v68, 7
    %v70 = vsub.s32 0, %v69
    %v71 = vrot.slane %v67, %v70
    %vm72 = vcmp.eq.s32.totalorder %v71, 1
    %73 = vset.pattern.permute.xlu0 3
    %74 = vperm.xlu0 %73, %v29
    %v75 = vpop.permute.xlu0 %74
    %v77 = vsel %vm72, %v75, %v65
    %v78 = vld [vmem:[%s2] sm:$0x1]
    %v80 = vlaneseq
    %v81 = vshrl.u32 %v80, 7
    %v82 = vsub.s32 0, %v81
    %v83 = vrot.slane %v78, %v82
    %v85 = vmul.f32 %v77, %v83
    %v86 = vand.u32 2147483647, %v85
    %vm87 = vcmp.le.f32.partialorder %v86, 0.7853982
    %vm88 = vcmp.lt.s32.totalorder %v85, 0
    %v89 = vand.u32 %v85, 2139095040
    %v90 = vshrl.u32 %v89, 23
    %v91 = vsub.s32 %v90, 127
    %v92 = vand.u32 2147483647, %v85
    %v93 = vand.u32 %v92, 8388607
    %v94 = vor.u32 %v93, 8388608
    %v95 = vsub.s32 0, %v94
    %v96 = vadd.s32 %v91, 1
    %vm97 = vcmp.gt.s32.totalorder %v96, 0
    %v98 = vsel %vm97, %v96, 0
    %v99 = vshrl.u32 %v98, 5
    %v100 = vand.u32 %v98, 31
    %v101 = vsub.s32 32, %v100
    %v102 = vshrl.u32 683565275, %v101
    %v103 = vshll.u32 683565275, %v100
    %v104 = vshrl.u32 2475754826, %v101
    %v105 = vor.u32 %v103, %v104
    %v106 = vshll.u32 2475754826, %v100
    %v107 = vshrl.u32 2131351028, %v101
    %v108 = vor.u32 %v106, %v107
    %v109 = vshll.u32 2131351028, %v100
    %v110 = vshrl.u32 2102212464, %v101
    %v111 = vor.u32 %v109, %v110
    %v112 = vshll.u32 2102212464, %v100
    %v113 = vshrl.u32 920167782, %v101
    %v114 = vor.u32 %v112, %v113
    %v115 = vshll.u32 920167782, %v100
    %v116 = vshrl.u32 1326507024, %v101
    %v117 = vor.u32 %v115, %v116
    %vm118 = vcmp.lt.s32.totalorder %v99, 1
    %vm119 = vcmp.lt.s32.totalorder %v99, 2
    %vm120 = vcmp.lt.s32.totalorder %v99, 3
    %vm121 = vcmp.lt.s32.totalorder %v99, 4
    %v122 = vsel %vm118, %v102, %v105
    %v123 = vsel %vm121, %v111, 2102212464
    %v124 = vsel %vm120, %v108, %v123
    %v125 = vsel %vm119, %v122, %v124
    %v126 = vsel %vm118, %v105, %v108
    %v127 = vsel %vm121, %v114, 920167782
    %v128 = vsel %vm120, %v111, %v127
    %v129 = vsel %vm119, %v126, %v128
    %v130 = vsel %vm118, %v108, %v111
    %v131 = vsel %vm121, %v117, 1326507024
    %v132 = vsel %vm120, %v114, %v131
    %v133 = vsel %vm119, %v130, %v132
    %v134 = vshll.u32 %v94, 8
    %v135 = vmul.u32.u64.compose %v134, %v133
    %v136 = vextract.low.u32 %v135
    %v137 = vextract.high.u32 %v135
    %v138 = vmul.u32.u64.compose %v134, %v129
    %v139 = vextract.low.u32 %v138
    %v140 = vextract.high.u32 %v138
    %v141 = vmul.u32 %v134, %v125
    %v142 = vadd.s32 %v137, %v139
    %vm143 = vc.u32 %v137, %v139
    %v144 = vadd.s32 %v140, 1
    %v145 = vsel %vm143, %v144, %v140
    %v146 = vadd.s32 %v141, %v145
    %v147 = vadd.s32 %v146, 536870912
    %v148 = vshrl.u32 %v147, 30
    %v149 = vshll.u32 %v148, 30
    %v150 = vsub.s32 %v146, %v149
    %vm151 = vcmp.lt.s32.totalorder %v150, 0
    %v152 = vsub.s32 0, %v150
    %v153 = vsel %vm151, %v152, %v150
    %v154 = vclz %v153
    %v155 = vsub.s32 %v154, 2
    %vm156 = vcmp.gt.s32.totalorder 0, %v155
    %v157 = vsel %vm156, 0, %v155
    %v158 = vsub.s32 32, %v157
    %v159 = vshll.u32 %v150, %v157
    %v160 = vshrl.u32 %v142, %v158
    %v161 = vor.u32 %v159, %v160
    %v162 = vsub.s32 4294967266, %v157
    %v163 = vadd.s32 %v162, 127
    %v164 = vshll.u32 %v163, 23
    %v165 = vor.u32 4788187, %v164
    %v166 = vand.u32 2147483647, %v165
    %v168 = vcvt.s32.f32 %v161
    %v169 = vmul.f32 %v168, %v166
    %v170 = vxor.u32 %v169, 2147483648
    %v171 = vsel %vm88, %v170, %v169
    %v172 = vsub.s32 4, %v148
    %v173 = vsel %vm88, %v172, %v148
    %v174 = vsel %vm87, %v85, %v171
    %v175 = vsel %vm87, 0, %v173
    %v176 = vcosq.f32.pop %v174
    %v177 = vsinq.f32.pop %v174
    %vm178 = vweird.f32 %v85
    %v179 = vadd.s32 %v175, 3
    %v180 = vand.u32 %v179, 3
    %vm181 = vcmp.lt.s32.totalorder %v180, 2
    %vm182 = vcmp.eq.s32.totalorder %v180, 0
    %v183 = vxor.u32 %v177, 2147483648
    %v184 = vsel %vm182, %v176, %v183
    %vm185 = vcmp.eq.s32.totalorder %v180, 2
    %v186 = vxor.u32 %v176, 2147483648
    %v187 = vsel %vm185, %v186, %v177
    %v188 = vsel %vm181, %v184, %v187
    %v189 = vsel %vm178, nan, %v188
    %v190 = vand.u32 2147483647, %v85
    %vm191 = vcmp.le.f32.partialorder %v190, 0.7853982
    %vm192 = vcmp.lt.s32.totalorder %v85, 0
    %v193 = vand.u32 %v85, 2139095040
    %v194 = vshrl.u32 %v193, 23
    %v195 = vsub.s32 %v194, 127
    %v196 = vand.u32 2147483647, %v85
    %v197 = vand.u32 %v196, 8388607
    %v198 = vor.u32 %v197, 8388608
    %v199 = vsub.s32 0, %v198
    %v200 = vadd.s32 %v195, 1
    %vm201 = vcmp.gt.s32.totalorder %v200, 0
    %v202 = vsel %vm201, %v200, 0
    %v203 = vshrl.u32 %v202, 5
    %v204 = vand.u32 %v202, 31
    %v205 = vsub.s32 32, %v204
    %v206 = vshrl.u32 683565275, %v205
    %v207 = vshll.u32 683565275, %v204
    %v208 = vshrl.u32 2475754826, %v205
    %v209 = vor.u32 %v207, %v208
    %v210 = vshll.u32 2475754826, %v204
    %v211 = vshrl.u32 2131351028, %v205
    %v212 = vor.u32 %v210, %v211
    %v213 = vshll.u32 2131351028, %v204
    %v214 = vshrl.u32 2102212464, %v205
    %v215 = vor.u32 %v213, %v214
    %v216 = vshll.u32 2102212464, %v204
    %v217 = vshrl.u32 920167782, %v205
    %v218 = vor.u32 %v216, %v217
    %v219 = vshll.u32 920167782, %v204
    %v220 = vshrl.u32 1326507024, %v205
    %v221 = vor.u32 %v219, %v220
    %vm222 = vcmp.lt.s32.totalorder %v203, 1
    %vm223 = vcmp.lt.s32.totalorder %v203, 2
    %vm224 = vcmp.lt.s32.totalorder %v203, 3
    %vm225 = vcmp.lt.s32.totalorder %v203, 4
    %v226 = vsel %vm222, %v206, %v209
    %v227 = vsel %vm225, %v215, 2102212464
    %v228 = vsel %vm224, %v212, %v227
    %v229 = vsel %vm223, %v226, %v228
    %v230 = vsel %vm222, %v209, %v212
    %v231 = vsel %vm225, %v218, 920167782
    %v232 = vsel %vm224, %v215, %v231
    %v233 = vsel %vm223, %v230, %v232
    %v234 = vsel %vm222, %v212, %v215
    %v235 = vsel %vm225, %v221, 1326507024
    %v236 = vsel %vm224, %v218, %v235
    %v237 = vsel %vm223, %v234, %v236
    %v238 = vshll.u32 %v198, 8
    %v239 = vmul.u32.u64.compose %v238, %v237
    %v240 = vextract.low.u32 %v239
    %v241 = vextract.high.u32 %v239
    %v242 = vmul.u32.u64.compose %v238, %v233
    %v243 = vextract.low.u32 %v242
    %v244 = vextract.high.u32 %v242
    %v245 = vmul.u32 %v238, %v229
    %v246 = vadd.s32 %v241, %v243
    %vm247 = vc.u32 %v241, %v243
    %v248 = vadd.s32 %v244, 1
    %v249 = vsel %vm247, %v248, %v244
    %v250 = vadd.s32 %v245, %v249
    %v251 = vadd.s32 %v250, 536870912
    %v252 = vshrl.u32 %v251, 30
    %v253 = vshll.u32 %v252, 30
    %v254 = vsub.s32 %v250, %v253
    %vm255 = vcmp.lt.s32.totalorder %v254, 0
    %v256 = vsub.s32 0, %v254
    %v257 = vsel %vm255, %v256, %v254
    %v258 = vclz %v257
    %v259 = vsub.s32 %v258, 2
    %vm260 = vcmp.gt.s32.totalorder 0, %v259
    %v261 = vsel %vm260, 0, %v259
    %v262 = vsub.s32 32, %v261
    %v263 = vshll.u32 %v254, %v261
    %v264 = vshrl.u32 %v246, %v262
    %v265 = vor.u32 %v263, %v264
    %v266 = vsub.s32 4294967266, %v261
    %v267 = vadd.s32 %v266, 127
    %v268 = vshll.u32 %v267, 23
    %v269 = vor.u32 4788187, %v268
    %v270 = vand.u32 2147483647, %v269
    %v272 = vcvt.s32.f32 %v265
    %v273 = vmul.f32 %v272, %v270
    %v274 = vxor.u32 %v273, 2147483648
    %v275 = vsel %vm192, %v274, %v273
    %v276 = vsub.s32 4, %v252
    %v277 = vsel %vm192, %v276, %v252
    %v278 = vsel %vm191, %v85, %v275
    %v279 = vsel %vm191, 0, %v277
    %v280 = vcosq.f32.pop %v278
    %v281 = vsinq.f32.pop %v278
    %vm282 = vweird.f32 %v85
    %v283 = vand.u32 %v279, 3
    %vm284 = vcmp.lt.s32.totalorder %v283, 2
    %vm285 = vcmp.eq.s32.totalorder %v283, 0
    %v286 = vxor.u32 %v281, 2147483648
    %v287 = vsel %vm285, %v280, %v286
    %vm288 = vcmp.eq.s32.totalorder %v283, 2
    %v289 = vxor.u32 %v280, 2147483648
    %v290 = vsel %vm288, %v289, %v281
    %v291 = vsel %vm284, %v287, %v290
    %v292 = vsel %vm282, nan, %v291
    %vm293 = vcmask 125952
    %294 = vst.msk [vmem:[#allocation5] sm:$0xf] %vm293, %v189
    %296 = vrot.lane.b32.xlu0 %v292, 16
    %v297 = vpop.permute.xlu0 %296
    %vm299 = vcmask 257152
    %300 = vst.msk [vmem:[#allocation5] sm:$0xf] %vm299, %v297
    %302 = vrot.lane.b32.xlu0 %v189, 16
    %v303 = vpop.permute.xlu0 %302
    %vm305 = vcmask 388352
    %306 = vst.msk [vmem:[#allocation5] sm:$0xf] %vm305, %v303
    %307 = vrot.lane.b32.xlu0 %v292, 32
    %v308 = vpop.permute.xlu0 %307
    %vm310 = vcmask 519552
    %311 = vst.msk [vmem:[#allocation5] sm:$0xf] %vm310, %v308
    %312 = vrot.lane.b32.xlu0 %v189, 32
    %v313 = vpop.permute.xlu0 %312
    %vm315 = vcmask 650752
    %316 = vst.msk [vmem:[#allocation5] sm:$0xf] %vm315, %v313
    %317 = vrot.lane.b32.xlu0 %v292, 48
    %v318 = vpop.permute.xlu0 %317
    %vm320 = vcmask 781952
    %321 = vst.msk [vmem:[#allocation5] sm:$0xf] %vm320, %v318
    %322 = vrot.lane.b32.xlu0 %v189, 48
    %v323 = vpop.permute.xlu0 %322
    %vm325 = vcmask 913152
    %326 = vst.msk [vmem:[#allocation5] sm:$0xf] %vm325, %v323
    %327 = vrot.lane.b32.xlu0 %v292, 64
    %v328 = vpop.permute.xlu0 %327
    %vm330 = vcmask 1044352
    %331 = vst.msk [vmem:[#allocation5] sm:$0xf] %vm330, %v328
    // Predicated region
    $region18: #{tpu_custom_call.1} parent=1 // pred_check
      _
    $region19: #{tpu_custom_call.1} parent=1 // pred_check_branch
      %333 = sbr.rel (0) target = $region21
    $region20: #{tpu_custom_call.1} parent=1 // pred_region
      %s335 = ssub.s32 64, 64
      %336 = vsyncadd [#allocation4], %s335
      %s338 = sshll.u32 [#allocation5], 4
      %s339 = int_to_ptr.vmem [resolvable:$true] %s338
      %341 = dma.vmem_to_hbm [thread:$0]  %s339, 64, %s3, [#allocation4]
    $region21: #{tpu_custom_call.1} parent=1 // pred_fallthru
      _
    // Predicated region
    $region22: #{tpu_custom_call.1} parent=1 // pred_check
      _
    $region23: #{tpu_custom_call.1} parent=1 // pred_check_branch
      %343 = sbr.rel (0) target = $region25
    $region24: #{tpu_custom_call.1} parent=1 // pred_region
      %344 = dma.done [#allocation4], 64
    $region25: #{tpu_custom_call.1} parent=1 // pred_fallthru
      _
    %345 = vsyncpa [#allocation3], 1
    %346 = vsyncpa [#allocation4], 1

</llo_original>
